<compile_context>
chip_gen: v6e
topology: v6e:2x2x1
jax: 0.10.0
libtpu: 0.0.40
codegen_flags: <defaults>
</compile_context>

<pallas_src>
from functools import partial

import jax
import jax.numpy as jnp
from jax import lax
from jax.experimental import pallas as pl
from jax.experimental.pallas import tpu as pltpu


def _attn_kernel(x_ref, wqkv_ref, wproj_ref, bproj_ref,   # inputs
                 o_ref, attn_ref,                          # outputs
                 ov_scratch,                               # scratch
                 *, num_heads, head_dim):
    C = num_heads * head_dim

    x = x_ref[0]                                             # (N, C) bf16

    # Fused qkv projection for ALL heads: one wide MXU matmul, f32 accumulate.
    # Column layout of Wqkv is (3, H, Dh) flattened, matching the PyTorch
    # reshape(B, N, 3, H, Dh); the scale is pre-folded into the q columns.
    qkv = jnp.dot(x, wqkv_ref[...],
                  preferred_element_type=jnp.float32)        # (N, 3C) f32

    for h in range(num_heads):
        lo = h * head_dim
        hi = lo + head_dim
        q = qkv[:, lo:hi]                                    # (N, Dh) scale folded
        k = qkv[:, C + lo:C + hi]                            # (N, Dh)
        v = qkv[:, 2 * C + lo:2 * C + hi]                    # (N, Dh)

        # Scores: contract Dh directly -- no materialized transpose of k.
        s = lax.dot_general(
            q.astype(jnp.bfloat16), k.astype(jnp.bfloat16),
            dimension_numbers=(((1,), (1,)), ((), ())),
            preferred_element_type=jnp.float32)              # (N, N) f32

        # Numerically stable softmax in f32; reciprocal goes to the EUP slot.
        s = s - jnp.max(s, axis=-1, keepdims=True)
        p = jnp.exp(s)
        p = p * pl.reciprocal(jnp.sum(p, axis=-1, keepdims=True), approx=True)

        attn_ref[0, h] = p.astype(attn_ref.dtype)            # (N, N)

        # This head's context, accumulated into the bf16 (N, C) scratch at its
        # column block; the output projection is deferred to a single matmul.
        ov = jnp.dot(p.astype(jnp.bfloat16), v.astype(jnp.bfloat16),
                     preferred_element_type=jnp.float32)     # (N, Dh)
        ov_scratch[:, lo:hi] = ov.astype(jnp.bfloat16)

    # Single full-width output projection + bias, one write to o_ref.
    out = jnp.dot(ov_scratch[...], wproj_ref[...],
                  preferred_element_type=jnp.float32)        # (N, C) f32
    o_ref[0] = out + bproj_ref[...]


def vit_attention(x, wqkv, wproj, bproj, *, num_heads, scale,
                  attn_dtype=jnp.float32):
    B, N, C = x.shape
    H = num_heads
    Dh = C // H
    assert Dh * H == C

    # Wrapper-side weight prep (done once, outside the kernel):
    #   * fold softmax scale into the q columns of the fused qkv weight,
    #   * cast weights and x to bf16 (halves their DMA; f32 accumulation kept
    #     in-kernel on the MXU).
    col_scale = jnp.concatenate(
        [jnp.full((C,), scale, dtype=wqkv.dtype),
         jnp.ones((2 * C,), dtype=wqkv.dtype)])
    wqkv_b = (wqkv * col_scale[None, :]).astype(jnp.bfloat16)    # (C, 3C)
    wproj_b = wproj.astype(jnp.bfloat16)                         # (C, C)
    x_b = x.astype(jnp.bfloat16)                                 # (B, N, C)

    kernel = partial(_attn_kernel, num_heads=H, head_dim=Dh)

    out_shape = (
        jax.ShapeDtypeStruct((B, N, C), jnp.float32),    # projected output
        jax.ShapeDtypeStruct((B, H, N, N), attn_dtype),  # attention weights
    )

    grid_spec = pltpu.PrefetchScalarGridSpec(
        num_scalar_prefetch=0,
        grid=(B,),
        in_specs=[
            pl.BlockSpec((1, N, C), lambda b: (b, 0, 0)),      # x[b]
            pl.BlockSpec((C, 3 * C), lambda b: (0, 0)),        # Wqkv (resident)
            pl.BlockSpec((C, C), lambda b: (0, 0)),            # Wproj (resident)
            pl.BlockSpec((1, C), lambda b: (0, 0)),            # b_proj (resident)
        ],
        out_specs=[
            pl.BlockSpec((1, N, C), lambda b: (b, 0, 0)),
            pl.BlockSpec((1, H, N, N), lambda b: (b, 0, 0, 0)),
        ],
        scratch_shapes=[
            pltpu.VMEM((N, C), jnp.bfloat16),                  # per-batch ov slab
        ],
    )

    return pl.pallas_call(
        kernel,
        out_shape=out_shape,
        grid_spec=grid_spec,
        compiler_params=pltpu.CompilerParams(
            dimension_semantics=("parallel",),
            vmem_limit_bytes=64 * 1024 * 1024),
    )(x_b, wqkv_b, wproj_b, bproj)


def _reference(x, wqkv, wproj, bproj, *, num_heads, scale):
    # Pure-JAX mirror of the PyTorch forward, for a correctness check.
    B, N, C = x.shape
    H = num_heads
    Dh = C // H
    qkv = x @ wqkv                                               # (B, N, 3C)
    qkv = qkv.reshape(B, N, 3, H, Dh).transpose(2, 0, 3, 1, 4)   # (3, B, H, N, Dh)
    q, k, v = qkv[0], qkv[1], qkv[2]
    attn = jnp.einsum('bhnd,bhmd->bhnm', q, k) * scale
    attn = jax.nn.softmax(attn, axis=-1)
    out = jnp.einsum('bhnm,bhmd->bhnd', attn, v)                 # (B, H, N, Dh)
    out = out.transpose(0, 2, 1, 3).reshape(B, N, C)
    out = out @ wproj + bproj[0]
    return out, attn


if __name__ == "__main__":
    # Small shapes consistent with the module: dim=32, num_heads=4 (head_dim=8).
    B, N, C = 2, 8, 32
    num_heads = 4
    head_dim = C // num_heads
    scale = head_dim ** (-0.5)          # qk_scale=None -> head_dim**-0.5

    key = jax.random.PRNGKey(0)
    kx, kqkv, kproj, kb = jax.random.split(key, 4)

    x = jax.random.normal(kx, (B, N, C), dtype=jnp.float32)
    # qkv_bias=False (module default) -> no qkv bias term.
    wqkv = 0.02 * jax.random.normal(kqkv, (C, 3 * C), dtype=jnp.float32)
    wproj = 0.02 * jax.random.normal(kproj, (C, C), dtype=jnp.float32)
    bproj = 0.02 * jax.random.normal(kb, (1, C), dtype=jnp.float32)

    out, attn = vit_attention(x, wqkv, wproj, bproj,
                              num_heads=num_heads, scale=scale)
    jax.block_until_ready((out, attn))

    out_ref, attn_ref = _reference(x, wqkv, wproj, bproj,
                                   num_heads=num_heads, scale=scale)
    # bf16 MXU operands with f32 accumulation (+ approx reciprocal in softmax)
    # -> slightly looser tolerance than pure f32.
    assert jnp.allclose(out, out_ref, atol=1e-2, rtol=1e-2)
    assert jnp.allclose(attn, attn_ref, atol=1e-2, rtol=1e-2)

    print("KERNEL_OK")
</pallas_src>

<mosaic_0001>
module attributes {stable_mosaic.version = 11 : i64} {
  func.func @_attn_kernel(%arg0: i32, %arg1: memref<1x8x32xbf16, #tpu.memory_space<vmem>>, %arg2: memref<32x96xbf16, #tpu.memory_space<vmem>>, %arg3: memref<32x32xbf16, #tpu.memory_space<vmem>>, %arg4: memref<1x32xf32, #tpu.memory_space<vmem>>, %arg5: memref<1x8x32xf32, #tpu.memory_space<vmem>>, %arg6: memref<1x4x8x8xf32, #tpu.memory_space<vmem>>, %arg7: memref<8x32xbf16, #tpu.memory_space<vmem>>) attributes {dimension_semantics = [#tpu.dimension_semantics<parallel>], iteration_bounds = array<i64: 2>, scalar_prefetch = 0 : i64, scratch_operands = 1 : i64, tpu.core_type = #tpu.core_type<tc>, window_params = [{transform_indices = @transform_0, window_bounds = array<i64: 1, 8, 32>}, {pipeline_mode = #tpu.pipeline_mode<synchronous>, transform_indices = @transform_1, window_bounds = array<i64: 32, 96>}, {pipeline_mode = #tpu.pipeline_mode<synchronous>, transform_indices = @transform_2, window_bounds = array<i64: 32, 32>}, {pipeline_mode = #tpu.pipeline_mode<synchronous>, transform_indices = @transform_3, window_bounds = array<i64: 1, 32>}, {transform_indices = @transform_4, window_bounds = array<i64: 1, 8, 32>}, {transform_indices = @transform_5, window_bounds = array<i64: 1, 4, 8, 8>}]} {
    %c0 = arith.constant 0 : index
    %c0_0 = arith.constant 0 : index
    %c0_1 = arith.constant 0 : index
    %0 = vector.load %arg1[%c0, %c0_0, %c0_1] : memref<1x8x32xbf16, #tpu.memory_space<vmem>>, vector<1x8x32xbf16>
    %1 = vector.shape_cast %0 : vector<1x8x32xbf16> to vector<8x32xbf16>
    %c0_2 = arith.constant 0 : index
    %c0_3 = arith.constant 0 : index
    %2 = vector.load %arg2[%c0_2, %c0_3] : memref<32x96xbf16, #tpu.memory_space<vmem>>, vector<32x96xbf16>
    %cst = arith.constant dense<0.000000e+00> : vector<8x96xf32>
    %3 = tpu.matmul %1, %2, %cst {dimension_numbers = #tpu.dot_dimension_numbers<[1], [0], [0], [1], [0, 0, 1, 1], [], []>} : vector<8x32xbf16>, vector<32x96xbf16>, vector<8x96xf32> -> vector<8x96xf32>
    %4 = vector.extract_strided_slice %3 {offsets = [0, 0], sizes = [8, 8], strides = [1, 1]} : vector<8x96xf32> to vector<8x8xf32>
    %5 = vector.extract_strided_slice %3 {offsets = [0, 32], sizes = [8, 8], strides = [1, 1]} : vector<8x96xf32> to vector<8x8xf32>
    %6 = vector.extract_strided_slice %3 {offsets = [0, 64], sizes = [8, 8], strides = [1, 1]} : vector<8x96xf32> to vector<8x8xf32>
    %7 = arith.truncf %4 : vector<8x8xf32> to vector<8x8xbf16>
    %8 = arith.truncf %5 : vector<8x8xf32> to vector<8x8xbf16>
    %cst_4 = arith.constant dense<0.000000e+00> : vector<8x8xf32>
    %9 = tpu.matmul %7, %8, %cst_4 {dimension_numbers = #tpu.dot_dimension_numbers<[1], [1], [0], [0], [0, 0, 1, 0], [], []>} : vector<8x8xbf16>, vector<8x8xbf16>, vector<8x8xf32> -> vector<8x8xf32>
    %cst_5 = arith.constant dense<0xFF800000> : vector<8xf32>
    %10 = vector.multi_reduction <maximumf>, %9, %cst_5 [1] : vector<8x8xf32> to vector<8xf32>
    %11 = vector.shape_cast %10 : vector<8xf32> to vector<8x1xf32>
    %12 = vector.broadcast %11 : vector<8x1xf32> to vector<8x8xf32>
    %13 = arith.subf %9, %12 : vector<8x8xf32>
    %14 = math.exp %13 : vector<8x8xf32>
    %cst_6 = arith.constant dense<0.000000e+00> : vector<8xf32>
    %15 = vector.multi_reduction <add>, %14, %cst_6 [1] : vector<8x8xf32> to vector<8xf32>
    %16 = vector.shape_cast %15 : vector<8xf32> to vector<8x1xf32>
    %17 = tpu.reciprocal %16 {approx = true} : vector<8x1xf32> -> vector<8x1xf32>
    %18 = vector.broadcast %17 : vector<8x1xf32> to vector<8x8xf32>
    %19 = arith.mulf %14, %18 : vector<8x8xf32>
    %c0_7 = arith.constant 0 : index
    %c0_8 = arith.constant 0 : index
    %c0_9 = arith.constant 0 : index
    %c0_10 = arith.constant 0 : index
    %20 = vector.load %arg6[%c0_7, %c0_8, %c0_9, %c0_10] : memref<1x4x8x8xf32, #tpu.memory_space<vmem>>, vector<1x1x8x8xf32>
    %21 = vector.shape_cast %20 : vector<1x1x8x8xf32> to vector<8x8xf32>
    %22 = vector.shape_cast %19 : vector<8x8xf32> to vector<1x1x8x8xf32>
    tpu.vector_store %arg6[%c0_7, %c0_8, %c0_9, %c0_10], %22 {strides = array<i32>} : memref<1x4x8x8xf32, #tpu.memory_space<vmem>>, vector<1x1x8x8xf32>,
    %23 = arith.truncf %19 : vector<8x8xf32> to vector<8x8xbf16>
    %24 = arith.truncf %6 : vector<8x8xf32> to vector<8x8xbf16>
    %cst_11 = arith.constant dense<0.000000e+00> : vector<8x8xf32>
    %25 = tpu.matmul %23, %24, %cst_11 {dimension_numbers = #tpu.dot_dimension_numbers<[1], [0], [0], [1], [0, 0, 1, 1], [], []>} : vector<8x8xbf16>, vector<8x8xbf16>, vector<8x8xf32> -> vector<8x8xf32>
    %26 = arith.truncf %25 : vector<8x8xf32> to vector<8x8xbf16>
    %c0_12 = arith.constant 0 : index
    %c0_13 = arith.constant 0 : index
    %27 = vector.load %arg7[%c0_12, %c0_13] : memref<8x32xbf16, #tpu.memory_space<vmem>>, vector<8x8xbf16>
    tpu.vector_store %arg7[%c0_12, %c0_13], %26 {strides = array<i32>} : memref<8x32xbf16, #tpu.memory_space<vmem>>, vector<8x8xbf16>,
    %28 = vector.extract_strided_slice %3 {offsets = [0, 8], sizes = [8, 8], strides = [1, 1]} : vector<8x96xf32> to vector<8x8xf32>
    %29 = vector.extract_strided_slice %3 {offsets = [0, 40], sizes = [8, 8], strides = [1, 1]} : vector<8x96xf32> to vector<8x8xf32>
    %30 = vector.extract_strided_slice %3 {offsets = [0, 72], sizes = [8, 8], strides = [1, 1]} : vector<8x96xf32> to vector<8x8xf32>
    %31 = arith.truncf %28 : vector<8x8xf32> to vector<8x8xbf16>
    %32 = arith.truncf %29 : vector<8x8xf32> to vector<8x8xbf16>
    %cst_14 = arith.constant dense<0.000000e+00> : vector<8x8xf32>
    %33 = tpu.matmul %31, %32, %cst_14 {dimension_numbers = #tpu.dot_dimension_numbers<[1], [1], [0], [0], [0, 0, 1, 0], [], []>} : vector<8x8xbf16>, vector<8x8xbf16>, vector<8x8xf32> -> vector<8x8xf32>
    %cst_15 = arith.constant dense<0xFF800000> : vector<8xf32>
    %34 = vector.multi_reduction <maximumf>, %33, %cst_15 [1] : vector<8x8xf32> to vector<8xf32>
    %35 = vector.shape_cast %34 : vector<8xf32> to vector<8x1xf32>
    %36 = vector.broadcast %35 : vector<8x1xf32> to vector<8x8xf32>
    %37 = arith.subf %33, %36 : vector<8x8xf32>
    %38 = math.exp %37 : vector<8x8xf32>
    %cst_16 = arith.constant dense<0.000000e+00> : vector<8xf32>
    %39 = vector.multi_reduction <add>, %38, %cst_16 [1] : vector<8x8xf32> to vector<8xf32>
    %40 = vector.shape_cast %39 : vector<8xf32> to vector<8x1xf32>
    %41 = tpu.reciprocal %40 {approx = true} : vector<8x1xf32> -> vector<8x1xf32>
    %42 = vector.broadcast %41 : vector<8x1xf32> to vector<8x8xf32>
    %43 = arith.mulf %38, %42 : vector<8x8xf32>
    %c0_17 = arith.constant 0 : index
    %c1 = arith.constant 1 : index
    %c0_18 = arith.constant 0 : index
    %c0_19 = arith.constant 0 : index
    %44 = vector.load %arg6[%c0_17, %c1, %c0_18, %c0_19] : memref<1x4x8x8xf32, #tpu.memory_space<vmem>>, vector<1x1x8x8xf32>
    %45 = vector.shape_cast %44 : vector<1x1x8x8xf32> to vector<8x8xf32>
    %46 = vector.shape_cast %43 : vector<8x8xf32> to vector<1x1x8x8xf32>
    tpu.vector_store %arg6[%c0_17, %c1, %c0_18, %c0_19], %46 {strides = array<i32>} : memref<1x4x8x8xf32, #tpu.memory_space<vmem>>, vector<1x1x8x8xf32>,
    %47 = arith.truncf %43 : vector<8x8xf32> to vector<8x8xbf16>
    %48 = arith.truncf %30 : vector<8x8xf32> to vector<8x8xbf16>
    %cst_20 = arith.constant dense<0.000000e+00> : vector<8x8xf32>
    %49 = tpu.matmul %47, %48, %cst_20 {dimension_numbers = #tpu.dot_dimension_numbers<[1], [0], [0], [1], [0, 0, 1, 1], [], []>} : vector<8x8xbf16>, vector<8x8xbf16>, vector<8x8xf32> -> vector<8x8xf32>
    %50 = arith.truncf %49 : vector<8x8xf32> to vector<8x8xbf16>
    %c0_21 = arith.constant 0 : index
    %c8 = arith.constant 8 : index
    %51 = vector.load %arg7[%c0_21, %c8] : memref<8x32xbf16, #tpu.memory_space<vmem>>, vector<8x8xbf16>
    tpu.vector_store %arg7[%c0_21, %c8], %50 {strides = array<i32>} : memref<8x32xbf16, #tpu.memory_space<vmem>>, vector<8x8xbf16>,
    %52 = vector.extract_strided_slice %3 {offsets = [0, 16], sizes = [8, 8], strides = [1, 1]} : vector<8x96xf32> to vector<8x8xf32>
    %53 = vector.extract_strided_slice %3 {offsets = [0, 48], sizes = [8, 8], strides = [1, 1]} : vector<8x96xf32> to vector<8x8xf32>
    %54 = vector.extract_strided_slice %3 {offsets = [0, 80], sizes = [8, 8], strides = [1, 1]} : vector<8x96xf32> to vector<8x8xf32>
    %55 = arith.truncf %52 : vector<8x8xf32> to vector<8x8xbf16>
    %56 = arith.truncf %53 : vector<8x8xf32> to vector<8x8xbf16>
    %cst_22 = arith.constant dense<0.000000e+00> : vector<8x8xf32>
    %57 = tpu.matmul %55, %56, %cst_22 {dimension_numbers = #tpu.dot_dimension_numbers<[1], [1], [0], [0], [0, 0, 1, 0], [], []>} : vector<8x8xbf16>, vector<8x8xbf16>, vector<8x8xf32> -> vector<8x8xf32>
    %cst_23 = arith.constant dense<0xFF800000> : vector<8xf32>
    %58 = vector.multi_reduction <maximumf>, %57, %cst_23 [1] : vector<8x8xf32> to vector<8xf32>
    %59 = vector.shape_cast %58 : vector<8xf32> to vector<8x1xf32>
    %60 = vector.broadcast %59 : vector<8x1xf32> to vector<8x8xf32>
    %61 = arith.subf %57, %60 : vector<8x8xf32>
    %62 = math.exp %61 : vector<8x8xf32>
    %cst_24 = arith.constant dense<0.000000e+00> : vector<8xf32>
    %63 = vector.multi_reduction <add>, %62, %cst_24 [1] : vector<8x8xf32> to vector<8xf32>
    %64 = vector.shape_cast %63 : vector<8xf32> to vector<8x1xf32>
    %65 = tpu.reciprocal %64 {approx = true} : vector<8x1xf32> -> vector<8x1xf32>
    %66 = vector.broadcast %65 : vector<8x1xf32> to vector<8x8xf32>
    %67 = arith.mulf %62, %66 : vector<8x8xf32>
    %c0_25 = arith.constant 0 : index
    %c2 = arith.constant 2 : index
    %c0_26 = arith.constant 0 : index
    %c0_27 = arith.constant 0 : index
    %68 = vector.load %arg6[%c0_25, %c2, %c0_26, %c0_27] : memref<1x4x8x8xf32, #tpu.memory_space<vmem>>, vector<1x1x8x8xf32>
    %69 = vector.shape_cast %68 : vector<1x1x8x8xf32> to vector<8x8xf32>
    %70 = vector.shape_cast %67 : vector<8x8xf32> to vector<1x1x8x8xf32>
    tpu.vector_store %arg6[%c0_25, %c2, %c0_26, %c0_27], %70 {strides = array<i32>} : memref<1x4x8x8xf32, #tpu.memory_space<vmem>>, vector<1x1x8x8xf32>,
    %71 = arith.truncf %67 : vector<8x8xf32> to vector<8x8xbf16>
    %72 = arith.truncf %54 : vector<8x8xf32> to vector<8x8xbf16>
    %cst_28 = arith.constant dense<0.000000e+00> : vector<8x8xf32>
    %73 = tpu.matmul %71, %72, %cst_28 {dimension_numbers = #tpu.dot_dimension_numbers<[1], [0], [0], [1], [0, 0, 1, 1], [], []>} : vector<8x8xbf16>, vector<8x8xbf16>, vector<8x8xf32> -> vector<8x8xf32>
    %74 = arith.truncf %73 : vector<8x8xf32> to vector<8x8xbf16>
    %c0_29 = arith.constant 0 : index
    %c16 = arith.constant 16 : index
    %75 = vector.load %arg7[%c0_29, %c16] : memref<8x32xbf16, #tpu.memory_space<vmem>>, vector<8x8xbf16>
    tpu.vector_store %arg7[%c0_29, %c16], %74 {strides = array<i32>} : memref<8x32xbf16, #tpu.memory_space<vmem>>, vector<8x8xbf16>,
    %76 = vector.extract_strided_slice %3 {offsets = [0, 24], sizes = [8, 8], strides = [1, 1]} : vector<8x96xf32> to vector<8x8xf32>
    %77 = vector.extract_strided_slice %3 {offsets = [0, 56], sizes = [8, 8], strides = [1, 1]} : vector<8x96xf32> to vector<8x8xf32>
    %78 = vector.extract_strided_slice %3 {offsets = [0, 88], sizes = [8, 8], strides = [1, 1]} : vector<8x96xf32> to vector<8x8xf32>
    %79 = arith.truncf %76 : vector<8x8xf32> to vector<8x8xbf16>
    %80 = arith.truncf %77 : vector<8x8xf32> to vector<8x8xbf16>
    %cst_30 = arith.constant dense<0.000000e+00> : vector<8x8xf32>
    %81 = tpu.matmul %79, %80, %cst_30 {dimension_numbers = #tpu.dot_dimension_numbers<[1], [1], [0], [0], [0, 0, 1, 0], [], []>} : vector<8x8xbf16>, vector<8x8xbf16>, vector<8x8xf32> -> vector<8x8xf32>
    %cst_31 = arith.constant dense<0xFF800000> : vector<8xf32>
    %82 = vector.multi_reduction <maximumf>, %81, %cst_31 [1] : vector<8x8xf32> to vector<8xf32>
    %83 = vector.shape_cast %82 : vector<8xf32> to vector<8x1xf32>
    %84 = vector.broadcast %83 : vector<8x1xf32> to vector<8x8xf32>
    %85 = arith.subf %81, %84 : vector<8x8xf32>
    %86 = math.exp %85 : vector<8x8xf32>
    %cst_32 = arith.constant dense<0.000000e+00> : vector<8xf32>
    %87 = vector.multi_reduction <add>, %86, %cst_32 [1] : vector<8x8xf32> to vector<8xf32>
    %88 = vector.shape_cast %87 : vector<8xf32> to vector<8x1xf32>
    %89 = tpu.reciprocal %88 {approx = true} : vector<8x1xf32> -> vector<8x1xf32>
    %90 = vector.broadcast %89 : vector<8x1xf32> to vector<8x8xf32>
    %91 = arith.mulf %86, %90 : vector<8x8xf32>
    %c0_33 = arith.constant 0 : index
    %c3 = arith.constant 3 : index
    %c0_34 = arith.constant 0 : index
    %c0_35 = arith.constant 0 : index
    %92 = vector.load %arg6[%c0_33, %c3, %c0_34, %c0_35] : memref<1x4x8x8xf32, #tpu.memory_space<vmem>>, vector<1x1x8x8xf32>
    %93 = vector.shape_cast %92 : vector<1x1x8x8xf32> to vector<8x8xf32>
    %94 = vector.shape_cast %91 : vector<8x8xf32> to vector<1x1x8x8xf32>
    tpu.vector_store %arg6[%c0_33, %c3, %c0_34, %c0_35], %94 {strides = array<i32>} : memref<1x4x8x8xf32, #tpu.memory_space<vmem>>, vector<1x1x8x8xf32>,
    %95 = arith.truncf %91 : vector<8x8xf32> to vector<8x8xbf16>
    %96 = arith.truncf %78 : vector<8x8xf32> to vector<8x8xbf16>
    %cst_36 = arith.constant dense<0.000000e+00> : vector<8x8xf32>
    %97 = tpu.matmul %95, %96, %cst_36 {dimension_numbers = #tpu.dot_dimension_numbers<[1], [0], [0], [1], [0, 0, 1, 1], [], []>} : vector<8x8xbf16>, vector<8x8xbf16>, vector<8x8xf32> -> vector<8x8xf32>
    %98 = arith.truncf %97 : vector<8x8xf32> to vector<8x8xbf16>
    %c0_37 = arith.constant 0 : index
    %c24 = arith.constant 24 : index
    %99 = vector.load %arg7[%c0_37, %c24] : memref<8x32xbf16, #tpu.memory_space<vmem>>, vector<8x8xbf16>
    tpu.vector_store %arg7[%c0_37, %c24], %98 {strides = array<i32>} : memref<8x32xbf16, #tpu.memory_space<vmem>>, vector<8x8xbf16>,
    %c0_38 = arith.constant 0 : index
    %c0_39 = arith.constant 0 : index
    %100 = vector.load %arg7[%c0_38, %c0_39] : memref<8x32xbf16, #tpu.memory_space<vmem>>, vector<8x32xbf16>
    %c0_40 = arith.constant 0 : index
    %c0_41 = arith.constant 0 : index
    %101 = vector.load %arg3[%c0_40, %c0_41] : memref<32x32xbf16, #tpu.memory_space<vmem>>, vector<32x32xbf16>
    %cst_42 = arith.constant dense<0.000000e+00> : vector<8x32xf32>
    %102 = tpu.matmul %100, %101, %cst_42 {dimension_numbers = #tpu.dot_dimension_numbers<[1], [0], [0], [1], [0, 0, 1, 1], [], []>} : vector<8x32xbf16>, vector<32x32xbf16>, vector<8x32xf32> -> vector<8x32xf32>
    %c0_43 = arith.constant 0 : index
    %c0_44 = arith.constant 0 : index
    %103 = vector.load %arg4[%c0_43, %c0_44] : memref<1x32xf32, #tpu.memory_space<vmem>>, vector<1x32xf32>
    %104 = vector.broadcast %103 : vector<1x32xf32> to vector<8x32xf32>
    %105 = arith.addf %102, %104 : vector<8x32xf32>
    %c0_45 = arith.constant 0 : index
    %c0_46 = arith.constant 0 : index
    %c0_47 = arith.constant 0 : index
    %106 = vector.load %arg5[%c0_45, %c0_46, %c0_47] : memref<1x8x32xf32, #tpu.memory_space<vmem>>, vector<1x8x32xf32>
    %107 = vector.shape_cast %106 : vector<1x8x32xf32> to vector<8x32xf32>
    %108 = vector.shape_cast %105 : vector<8x32xf32> to vector<1x8x32xf32>
    tpu.vector_store %arg5[%c0_45, %c0_46, %c0_47], %108 {strides = array<i32>} : memref<1x8x32xf32, #tpu.memory_space<vmem>>, vector<1x8x32xf32>,
    return
  }
  func.func @transform_0(%arg0: i32) -> (i32, i32, i32) {
    %c0_i32 = arith.constant 0 : i32
    %c0_i32_0 = arith.constant 0 : i32
    %c0_i32_1 = arith.constant 0 : i32
    return %arg0, %c0_i32, %c0_i32_0 : i32, i32, i32
  }
  func.func @transform_1(%arg0: i32) -> (i32, i32) {
    %c0_i32 = arith.constant 0 : i32
    %c0_i32_0 = arith.constant 0 : i32
    %c0_i32_1 = arith.constant 0 : i32
    return %c0_i32, %c0_i32_0 : i32, i32
  }
  func.func @transform_2(%arg0: i32) -> (i32, i32) {
    %c0_i32 = arith.constant 0 : i32
    %c0_i32_0 = arith.constant 0 : i32
    %c0_i32_1 = arith.constant 0 : i32
    return %c0_i32, %c0_i32_0 : i32, i32
  }
  func.func @transform_3(%arg0: i32) -> (i32, i32) {
    %c0_i32 = arith.constant 0 : i32
    %c0_i32_0 = arith.constant 0 : i32
    %c0_i32_1 = arith.constant 0 : i32
    return %c0_i32, %c0_i32_0 : i32, i32
  }
  func.func @transform_4(%arg0: i32) -> (i32, i32, i32) {
    %c0_i32 = arith.constant 0 : i32
    %c0_i32_0 = arith.constant 0 : i32
    %c0_i32_1 = arith.constant 0 : i32
    return %arg0, %c0_i32, %c0_i32_0 : i32, i32, i32
  }
  func.func @transform_5(%arg0: i32) -> (i32, i32, i32, i32) {
    %c0_i32 = arith.constant 0 : i32
    %c0_i32_0 = arith.constant 0 : i32
    %c0_i32_1 = arith.constant 0 : i32
    %c0_i32_2 = arith.constant 0 : i32
    return %arg0, %c0_i32, %c0_i32_0, %c0_i32_1 : i32, i32, i32, i32
  }
}

</mosaic_0001>

<llo_original>
// kernel: tpu_custom_call.1
$region0: #{tpu_custom_call.1}
  #allocation0 [shape = 'u32[]', space=smem, size = 0x4, offset = 0x4, fixed_abs, tag = 'smem constant byte address 0x4 - core index']
  #allocation1 [shape = 'u32[144,128]{1,0:T(1,128)}', space=vmem, size = 0x12000, scoped, tag = 'internal scratch']
  #allocation2 [shape = 'bf16[8,32]{1,0:T(8,128)(2,1)}', space=vmem, size = 0x800, scoped, tag = 'scratch operand']
  %s0 = inlined_call_operand.hbm [shape: bf16[2,8,32], index: 0, kind: input, shape index: {}]
  %s1 = inlined_call_operand.hbm [shape: bf16[32,96], index: 1, kind: input, shape index: {}]
  %s2 = inlined_call_operand.hbm [shape: bf16[32,32], index: 2, kind: input, shape index: {}]
  %s3 = inlined_call_operand.vmem [shape: f32[1,32], index: 3, kind: input, shape index: {}]
  %s4 = inlined_call_operand.hbm [shape: f32[2,8,32], index: 4, kind: output, shape index: {0}]
  %s5 = inlined_call_operand.hbm [shape: f32[2,4,8,8], index: 5, kind: output, shape index: {1}]
  %6 = xla_tuple %s4, %s5
  %s7 = sld [smem:[#allocation0]]
  $region69: #{tpu_custom_call.1} parent=0
    _
  %s9 = ssub.s32 1, %s7
  %s10 = scalar_select 0, %s9, %s7
  $region1: #{tpu_custom_call.1} parent=0
    #allocation3 [shape = 'u8[4096]{0}', space=vmem, size = 0x1000, scoped, tag = 'input window, operand 0']
    #allocation4 [shape = 's32[2]{0}', space=sflag, size = 0x8, scoped, tag = 'scoped memory for tpu_custom_call.1']
    #allocation5 [shape = 's32[2]{0}', space=sflag, size = 0x8, scoped, tag = 'scoped memory for tpu_custom_call.1']
    #allocation6 [shape = 'u8[8192]{0}', space=vmem, size = 0x2000, scoped, tag = 'input window, operand 1, single buffered']
    #allocation7 [shape = 's32[1]{0}', space=sflag, size = 0x4, scoped, tag = 'scoped memory for tpu_custom_call.1']
    #allocation8 [shape = 'u8[8192]{0}', space=vmem, size = 0x2000, scoped, tag = 'input window, operand 2, single buffered']
    #allocation9 [shape = 'u8[8192]{0}', space=vmem, size = 0x2000, scoped, tag = 'output window, operand 0']
    #allocation10 [shape = 'u8[32768]{0}', space=vmem, size = 0x8000, scoped, tag = 'output window, operand 1']
    #allocation11 [shape = 's32[2]{0}', space=sflag, size = 0x8, scoped, tag = 'scoped memory for tpu_custom_call.1']
    %11 = vsyncpa [#allocation4], 0
    %s12 = scalar_lea.sflag [#allocation4], 1
    %13 = vsyncpa %s12, 0
    %14 = vsyncpa [#allocation7], 0
    %15 = vsyncpa [#allocation5], 0
    %s16 = scalar_lea.sflag [#allocation5], 1
    %17 = vsyncpa %s16, 0
    %18 = vsyncpa [#allocation11], 0
    %s19 = scalar_lea.sflag [#allocation11], 1
    %20 = vsyncpa %s19, 0
    loop: start=0, step=1, limit=4
    $region2: #{tpu_custom_call.1} parent=1 // loop_pre_header
      _
    $region3: #{tpu_custom_call.1} parent=1 // loop_header
      %s22 = sphi 0, %s26
      %p23 = scmp.ge.s32.totalorder %s22, 4
      %s32 = sphi 0, %s34
      %s35 = sphi 0, %s32
      %s36 = sphi 0, %s35
      %s52 = sphi 0, %s36
      %s56 = sphi 0, %s56
      %s58 = sphi 0, %s56
      %s59 = sphi 0, %s58
      %s73 = sphi 0, %s59
      %s77 = sphi 0, %s77
      %s79 = sphi 0, %s77
      %s80 = sphi 0, %s79
      %s94 = sphi 0, %s80
      %s98 = sphi 0, %s98
      %s100 = sphi 0, %s98
      %s101 = sphi 0, %s100
      %s115 = sphi 0, %s101
      %s121 = sphi 0, %s123
      %s124 = sphi 0, %s121
      %s125 = sphi 0, %s124
      %s141 = sphi 0, %s125
      %s147 = sphi 0, %s149
      %s150 = sphi 0, %s147
      %s151 = sphi 0, %s150
      %s167 = sphi 0, %s151
    $region4: #{tpu_custom_call.1} parent=1 // loop_header_branch
      %25 = sbr.rel (%p23) target = $region8
    $region5: #{tpu_custom_call.1} parent=1 // loop_body
      %s27 = ssub.s32 %s22, 1
      %s28 = ssub.s32 %s22, 2
      %s29 = sadd.s32 %s22, 1
      %s30 = ssub.s32 %s22, %s29
      %p31 = scmp.eq.s32.totalorder %s30, 0
      %s33 = sadd.s32 %s32, 1
      %s34 = scalar_select %p31, %s32, %s33
      %p37 = pneg %p31
      %p38 = scmp.eq.s32.totalorder %s22, 1
      %p39 = por %p37, %p38
      %p40 = scmp.ne.s32.totalorder %s32, %s35
      %p41 = scmp.eq.s32.totalorder %s22, 0
      %p42 = por %p40, %p41
      %p43 = scmp.ne.s32.totalorder %s32, %s35
      %p44 = scmp.eq.s32.totalorder %s27, 1
      %p45 = por %p43, %p44
      %p46 = scmp.ne.s32.totalorder %s35, %s36
      %p47 = scmp.eq.s32.totalorder %s27, 0
      %p48 = por %p46, %p47
      %p49 = scmp.ne.s32.totalorder %s35, %s36
      %p50 = scmp.eq.s32.totalorder %s28, 1
      %p51 = por %p49, %p50
      %p53 = scmp.ne.s32.totalorder %s36, %s52
      %p54 = scmp.eq.s32.totalorder %s28, 0
      %p55 = por %p53, %p54
      %s57 = sadd.s32 %s56, 1
      %p60 = scmp.eq.s32.totalorder %s22, 1
      %p61 = scmp.ne.s32.totalorder %s56, %s58
      %p62 = scmp.eq.s32.totalorder %s22, 0
      %p63 = por %p61, %p62
      %p64 = scmp.ne.s32.totalorder %s56, %s58
      %p65 = scmp.eq.s32.totalorder %s27, 1
      %p66 = por %p64, %p65
      %p67 = scmp.ne.s32.totalorder %s58, %s59
      %p68 = scmp.eq.s32.totalorder %s27, 0
      %p69 = por %p67, %p68
      %p70 = scmp.ne.s32.totalorder %s58, %s59
      %p71 = scmp.eq.s32.totalorder %s28, 1
      %p72 = por %p70, %p71
      %p74 = scmp.ne.s32.totalorder %s59, %s73
      %p75 = scmp.eq.s32.totalorder %s28, 0
      %p76 = por %p74, %p75
      %s78 = sadd.s32 %s77, 1
      %p81 = scmp.eq.s32.totalorder %s22, 1
      %p82 = scmp.ne.s32.totalorder %s77, %s79
      %p83 = scmp.eq.s32.totalorder %s22, 0
      %p84 = por %p82, %p83
      %p85 = scmp.ne.s32.totalorder %s77, %s79
      %p86 = scmp.eq.s32.totalorder %s27, 1
      %p87 = por %p85, %p86
      %p88 = scmp.ne.s32.totalorder %s79, %s80
      %p89 = scmp.eq.s32.totalorder %s27, 0
      %p90 = por %p88, %p89
      %p91 = scmp.ne.s32.totalorder %s79, %s80
      %p92 = scmp.eq.s32.totalorder %s28, 1
      %p93 = por %p91, %p92
      %p95 = scmp.ne.s32.totalorder %s80, %s94
      %p96 = scmp.eq.s32.totalorder %s28, 0
      %p97 = por %p95, %p96
      %s99 = sadd.s32 %s98, 1
      %p102 = scmp.eq.s32.totalorder %s22, 1
      %p103 = scmp.ne.s32.totalorder %s98, %s100
      %p104 = scmp.eq.s32.totalorder %s22, 0
      %p105 = por %p103, %p104
      %p106 = scmp.ne.s32.totalorder %s98, %s100
      %p107 = scmp.eq.s32.totalorder %s27, 1
      %p108 = por %p106, %p107
      %p109 = scmp.ne.s32.totalorder %s100, %s101
      %p110 = scmp.eq.s32.totalorder %s27, 0
      %p111 = por %p109, %p110
      %p112 = scmp.ne.s32.totalorder %s100, %s101
      %p113 = scmp.eq.s32.totalorder %s28, 1
      %p114 = por %p112, %p113
      %p116 = scmp.ne.s32.totalorder %s101, %s115
      %p117 = scmp.eq.s32.totalorder %s28, 0
      %p118 = por %p116, %p117
      %s119 = ssub.s32 %s22, %s29
      %p120 = scmp.eq.s32.totalorder %s119, 0
      %s122 = sadd.s32 %s121, 1
      %s123 = scalar_select %p120, %s121, %s122
      %p126 = pneg %p120
      %p127 = scmp.eq.s32.totalorder %s22, 1
      %p128 = por %p126, %p127
      %p129 = scmp.ne.s32.totalorder %s121, %s124
      %p130 = scmp.eq.s32.totalorder %s22, 0
      %p131 = por %p129, %p130
      %p132 = scmp.ne.s32.totalorder %s121, %s124
      %p133 = scmp.eq.s32.totalorder %s27, 1
      %p134 = por %p132, %p133
      %p135 = scmp.ne.s32.totalorder %s124, %s125
      %p136 = scmp.eq.s32.totalorder %s27, 0
      %p137 = por %p135, %p136
      %p138 = scmp.ne.s32.totalorder %s124, %s125
      %p139 = scmp.eq.s32.totalorder %s28, 1
      %p140 = por %p138, %p139
      %p142 = scmp.ne.s32.totalorder %s125, %s141
      %p143 = scmp.eq.s32.totalorder %s28, 0
      %p144 = por %p142, %p143
      %s145 = ssub.s32 %s22, %s29
      %p146 = scmp.eq.s32.totalorder %s145, 0
      %s148 = sadd.s32 %s147, 1
      %s149 = scalar_select %p146, %s147, %s148
      %p152 = pneg %p146
      %p153 = scmp.eq.s32.totalorder %s22, 1
      %p154 = por %p152, %p153
      %p155 = scmp.ne.s32.totalorder %s147, %s150
      %p156 = scmp.eq.s32.totalorder %s22, 0
      %p157 = por %p155, %p156
      %p158 = scmp.ne.s32.totalorder %s147, %s150
      %p159 = scmp.eq.s32.totalorder %s27, 1
      %p160 = por %p158, %p159
      %p161 = scmp.ne.s32.totalorder %s150, %s151
      %p162 = scmp.eq.s32.totalorder %s27, 0
      %p163 = por %p161, %p162
      %p164 = scmp.ne.s32.totalorder %s150, %s151
      %p165 = scmp.eq.s32.totalorder %s28, 1
      %p166 = por %p164, %p165
      %p168 = scmp.ne.s32.totalorder %s151, %s167
      %p169 = scmp.eq.s32.totalorder %s28, 0
      %p170 = por %p168, %p169
      %p171 = scmp.le.s32.totalorder 1, %s22
      %p172 = scmp.lt.s32.totalorder %s22, 3
      %p173 = pnand %p171, %p172
      %p174 = pneg %p173
      // Predicated region
      $region9: #{tpu_custom_call.1} parent=5 // pred_check
        _
      $region10: #{tpu_custom_call.1} parent=5 // pred_check_branch
        %176 = sbr.rel (%p173) target = $region12
      $region11: #{tpu_custom_call.1} parent=5 // pred_region
        %s177 = ssub.s32 %s22, 1
        // Predicated region
        $region13: #{tpu_custom_call.1} parent=11 // pred_check
          %p178 = pneg %p69
        $region14: #{tpu_custom_call.1} parent=11 // pred_check_branch
          %180 = sbr.rel (%p178) target = $region16
        $region15: #{tpu_custom_call.1} parent=11 // pred_region
          %s182 = ssub.s32 256, 256
          %183 = vsyncadd [#allocation7], %s182
          %s184 = sshll.u32 [#allocation6], 4
          %s185 = int_to_ptr.vmem [resolvable:$true] %s184
          %190 = dma.hbm_to_vmem [thread:$0]  %s1, 256, %s185, [#allocation7], 64, 64, 4
        $region16: #{tpu_custom_call.1} parent=11 // pred_fallthru
          _
        // Predicated region
        $region17: #{tpu_custom_call.1} parent=11 // pred_check
          %p191 = pneg %p90
        $region18: #{tpu_custom_call.1} parent=11 // pred_check_branch
          %193 = sbr.rel (%p191) target = $region20
        $region19: #{tpu_custom_call.1} parent=11 // pred_region
          %s195 = ssub.s32 256, 256
          %196 = vsyncadd [#allocation7], %s195
          %s197 = sshll.u32 [#allocation8], 4
          %s198 = int_to_ptr.vmem [resolvable:$true] %s197
          %203 = dma.hbm_to_vmem [thread:$0]  %s2, 256, %s198, [#allocation7], 64, 64, 4
        $region20: #{tpu_custom_call.1} parent=11 // pred_fallthru
          _
        // Predicated region
        $region21: #{tpu_custom_call.1} parent=11 // pred_check
          %p204 = pneg %p111
        $region22: #{tpu_custom_call.1} parent=11 // pred_check_branch
          %206 = sbr.rel (%p204) target = $region24
        $region23: #{tpu_custom_call.1} parent=11 // pred_region
          _
        $region24: #{tpu_custom_call.1} parent=11 // pred_fallthru
          _
      $region12: #{tpu_custom_call.1} parent=5 // pred_fallthru
        _
      %p207 = scmp.lt.s32.totalorder %s22, 2
      // Predicated region
      $region25: #{tpu_custom_call.1} parent=5 // pred_check
        %p208 = pneg %p207
      $region26: #{tpu_custom_call.1} parent=5 // pred_check_branch
        %210 = sbr.rel (%p208) target = $region28
      $region27: #{tpu_custom_call.1} parent=5 // pred_region
        // Predicated region
        $region29: #{tpu_custom_call.1} parent=27 // pred_check
          %p211 = pneg %p42
        $region30: #{tpu_custom_call.1} parent=27 // pred_check_branch
          %213 = sbr.rel (%p211) target = $region32
        $region31: #{tpu_custom_call.1} parent=27 // pred_region
          %s214 = sand.u32 %s32, 1
          %s215 = scalar_lea.sflag [#allocation4], %s214
          %s216 = sand.u32 %s32, 1
          %s217 = smul.addr %s216, 4
          %s218 = scalar_lea.vmem [#allocation3], %s217
          %s220 = ssub.s32 64, 64
          %221 = vsyncadd %s215, %s220
          %s222 = smul.addr %s22, 64
          %s223 = scalar_lea.hbm %s0, %s222
          %s225 = sshll.u32 %s218, 4
          %s226 = int_to_ptr.vmem [resolvable:$true] %s225
          %228 = dma.hbm_to_vmem [thread:$0]  %s223, 64, %s226, %s215
        $region32: #{tpu_custom_call.1} parent=27 // pred_fallthru
          _
      $region28: #{tpu_custom_call.1} parent=5 // pred_fallthru
        _
      %p229 = scmp.le.s32.totalorder 1, %s22
      %p230 = scmp.lt.s32.totalorder %s22, 3
      %p231 = pnand %p229, %p230
      %p232 = pneg %p231
      // Predicated region
      $region33: #{tpu_custom_call.1} parent=5 // pred_check
        _
      $region34: #{tpu_custom_call.1} parent=5 // pred_check_branch
        %234 = sbr.rel (%p231) target = $region36
      $region35: #{tpu_custom_call.1} parent=5 // pred_region
        %s235 = ssub.s32 %s22, 1
        %s236 = sand.u32 %s35, 1
        %s237 = scalar_lea.sflag [#allocation4], %s236
        %s238 = sand.u32 %s35, 1
        %s239 = smul.addr %s238, 4
        %s240 = scalar_lea.vmem [#allocation3], %s239
        // Predicated region
        $region37: #{tpu_custom_call.1} parent=35 // pred_check
          %p241 = pneg %p48
        $region38: #{tpu_custom_call.1} parent=35 // pred_check_branch
          %243 = sbr.rel (%p241) target = $region40
        $region39: #{tpu_custom_call.1} parent=35 // pred_region
          %244 = dma.done %s237, 64
        $region40: #{tpu_custom_call.1} parent=35 // pred_fallthru
          _
        // Predicated region
        $region41: #{tpu_custom_call.1} parent=35 // pred_check
          %p245 = pneg %p69
        $region42: #{tpu_custom_call.1} parent=35 // pred_check_branch
          %247 = sbr.rel (%p245) target = $region44
        $region43: #{tpu_custom_call.1} parent=35 // pred_region
          %248 = dma.done [#allocation7], 256
        $region44: #{tpu_custom_call.1} parent=35 // pred_fallthru
          _
        // Predicated region
        $region45: #{tpu_custom_call.1} parent=35 // pred_check
          %p249 = pneg %p90
        $region46: #{tpu_custom_call.1} parent=35 // pred_check_branch
          %251 = sbr.rel (%p249) target = $region48
        $region47: #{tpu_custom_call.1} parent=35 // pred_region
          %252 = dma.done [#allocation7], 256
        $region48: #{tpu_custom_call.1} parent=35 // pred_fallthru
          _
        %s253 = sand.u32 %s35, 1
        %s254 = scalar_lea.sflag [#allocation4], %s253
        %s255 = sand.u32 %s35, 1
        %s256 = smul.addr %s255, 4
        %s257 = scalar_lea.vmem [#allocation3], %s256
        %p258 = pneg %p48
        %p259 = pneg %p45
        %p260 = pneg %p69
        %p261 = pneg %p66
        %p262 = pneg %p90
        %p263 = pneg %p87
        %p264 = pneg %p111
        %p265 = pneg %p108
        %p266 = pneg %p137
        %p267 = pneg %p134
        %s268 = sand.u32 %s124, 1
        %s269 = scalar_lea.sflag [#allocation5], %s268
        %s270 = sand.u32 %s124, 1
        %s271 = smul.addr %s270, 8
        %s272 = scalar_lea.vmem [#allocation9], %s271
        %p273 = pneg %p163
        %p274 = pneg %p160
        %s275 = sand.u32 %s150, 1
        %s276 = scalar_lea.sflag [#allocation11], %s275
        %s277 = sand.u32 %s150, 1
        %s278 = smul.addr %s277, 32
        %s279 = scalar_lea.vmem [#allocation10], %s278
        %v281 = vld [vmem:[%s240] sm:$0xf]
        %v282 = vld [vmem:[#allocation6] sm:$0xf]
        %v283 = vld [vmem:[#allocation6 + $0x4] sm:$0xf]
        %v284 = vld [vmem:[#allocation6 + $0x8] sm:$0xf]
        %v285 = vld [vmem:[#allocation6 + $0xc] sm:$0xf]
        %v290 = vunpack.c.l.b16 %v282
        %v291 = vunpack.c.l.b16 %v283
        %v292 = vunpack.c.l.b16 %v284
        %v293 = vunpack.c.l.b16 %v285
        %v294 = vpack.c.b16 %v291, %v290
        %v295 = vpack.c.b16 %v293, %v292
        %vm298 = vcmask 261120
        %v300 = vsel %vm298, %v281, 0
        %302 = vmatprep.subr.bf16.mxu0 0
        %303 = vmatpush1.bf16.msra.mxu0 0
        %304 = vmatprep.subr.bf16.mxu0 0
        %305 = vmatpush1.bf16.msra.mxu0 0
        %306 = vmatprep.subr.bf16.mxu0 0
        %307 = vmatpush1.bf16.msra.mxu0 0
        %308 = vmatprep.subr.bf16.mxu0 0
        %309 = vmatpush1.bf16.msra.mxu0 0
        %310 = vmatprep.subr.bf16.mxu0 0
        %311 = vmatpush1.bf16.msra.mxu0 0
        %312 = vmatprep.subr.bf16.mxu0 0
        %313 = vmatpush1.bf16.msra.mxu0 0
        %314 = vmatprep.subr.bf16.mxu0 0
        %315 = vmatpush1.bf16.msra.mxu0 %v295
        %316 = vmatprep.subr.bf16.mxu0 0
        %317 = vmatpush1.bf16.msra.mxu0 %v294
        %318 = vmatprep.subr.bf16.mxu0 0
        %319 = vmatpush2.bf16.msra.mxu0 0
        %320 = vmatprep.subr.bf16.mxu0 0
        %321 = vmatpush2.bf16.msra.mxu0 0
        %322 = vmatprep.subr.bf16.mxu0 0
        %323 = vmatpush2.bf16.msra.mxu0 0
        %324 = vmatprep.subr.bf16.mxu0 0
        %325 = vmatpush2.bf16.msra.mxu0 0
        %326 = vmatprep.subr.bf16.mxu0 0
        %327 = vmatpush2.bf16.msra.mxu0 0
        %328 = vmatprep.subr.bf16.mxu0 0
        %329 = vmatpush2.bf16.msra.mxu0 0
        %330 = vmatprep.subr.bf16.mxu0 0
        %331 = vmatpush2.bf16.msra.mxu0 0
        %332 = vmatprep.subr.bf16.mxu0 0
        %333 = vmatpush2.bf16.msra.mxu0 0
        %334 = vmatprep.mubr.bf16.mxu0 0
        %335 = vmatmul.mubr.bf16.gmra.mxu0 %v300
        %v336 = vpop.f32.mrf.mxu0
        %v337 = vadd.f32 0.0, %v336
        %v338 = vpop.f32.mrf.mxu0
        %v339 = vpop.f32.mrf.mxu0
        %v340 = vpop.f32.mrf.mxu0
        %341 = vdwg.mxu0
        %v342 = vpack.c.bf16 %v337, %v337
        %344 = vrot.lane.b32.xlu0 %v342, 96
        %v345 = vpop.permute.xlu0 %344
        %vm346 = vcmask 64512
        %v348 = vsel %vm346, %v342, 0
        %v351 = vsel %vm346, %v345, 0
        %353 = vmatprep.subr.bf16.mxu0 0
        %354 = vmatpush1.bf16.xpose.msra.mxu0 0
        %355 = vmatprep.subr.bf16.mxu0 0
        %356 = vmatpush1.bf16.xpose.msra.mxu0 0
        %357 = vmatprep.subr.bf16.mxu0 0
        %358 = vmatpush1.bf16.xpose.msra.mxu0 0
        %359 = vmatprep.subr.bf16.mxu0 0
        %360 = vmatpush1.bf16.xpose.msra.mxu0 0
        %361 = vmatprep.subr.bf16.mxu0 0
        %362 = vmatpush1.bf16.xpose.msra.mxu0 0
        %363 = vmatprep.subr.bf16.mxu0 0
        %364 = vmatpush1.bf16.xpose.msra.mxu0 0
        %365 = vmatprep.subr.bf16.mxu0 0
        %366 = vmatpush1.bf16.xpose.msra.mxu0 0
        %367 = vmatprep.subr.bf16.mxu0 0
        %368 = vmatpush1.bf16.xpose.msra.mxu0 %v351
        %369 = vmatprep.subr.bf16.mxu0 0
        %370 = vmatpush2.bf16.xpose.msra.mxu0 0
        %371 = vmatprep.subr.bf16.mxu0 0
        %372 = vmatpush2.bf16.xpose.msra.mxu0 0
        %373 = vmatprep.subr.bf16.mxu0 0
        %374 = vmatpush2.bf16.xpose.msra.mxu0 0
        %375 = vmatprep.subr.bf16.mxu0 0
        %376 = vmatpush2.bf16.xpose.msra.mxu0 0
        %377 = vmatprep.subr.bf16.mxu0 0
        %378 = vmatpush2.bf16.xpose.msra.mxu0 0
        %379 = vmatprep.subr.bf16.mxu0 0
        %380 = vmatpush2.bf16.xpose.msra.mxu0 0
        %381 = vmatprep.subr.bf16.mxu0 0
        %382 = vmatpush2.bf16.xpose.msra.mxu0 0
        %383 = vmatprep.subr.bf16.mxu0 0
        %384 = vmatpush2.bf16.xpose.msra.mxu0 0
        %385 = vmatprep.mubr.bf16.mxu0 0
        %386 = vmatmul.mubr.bf16.gmra.mxu0 %v348
        %v387 = vpop.f32.mrf.mxu0
        %v388 = vadd.f32 0.0, %v387
        %v389 = vpop.f32.mrf.mxu0
        %v390 = vpop.f32.mrf.mxu0
        %v391 = vpop.f32.mrf.mxu0
        %392 = vdwg.mxu0
        %v393 = vsel %vm346, %v388, -inf
        %394 = vmax.xlane.f32.xlu0 %v393
        %v395 = vpop.xlane.xlu0 %394
        %v396 = vsub.f32 %v388, %v395
        %v397 = vmul.f32 %v396, 1.442695
        %v398 = vpow.pop %v397
        %v399 = vsel %vm346, %v398, 0.0
        %400 = vadd.xlane.f32.xlu0 %v399
        %v401 = vpop.xlane.xlu0 %400
        %v402 = vrcp.pop %v401
        %v403 = vmul.f32 %v398, %v402
        %404 = vst.msk [vmem:[%s279] sm:$0xff] %vm346, %v403
        %v405 = vpack.c.bf16 %v403, %v403
        %406 = vrot.lane.b32.xlu0 %v342, 64
        %v407 = vpop.permute.xlu0 %406
        %v409 = vsel %vm346, %v405, 0
        %vm411 = vcmask 1043456
        %v413 = vsel %vm411, %v407, 0
        %415 = vmatprep.subr.bf16.mxu0 0
        %416 = vmatpush1.bf16.msra.mxu0 0
        %417 = vmatprep.subr.bf16.mxu0 0
        %418 = vmatpush1.bf16.msra.mxu0 0
        %419 = vmatprep.subr.bf16.mxu0 0
        %420 = vmatpush1.bf16.msra.mxu0 0
        %421 = vmatprep.subr.bf16.mxu0 0
        %422 = vmatpush1.bf16.msra.mxu0 0
        %423 = vmatprep.subr.bf16.mxu0 0
        %424 = vmatpush1.bf16.msra.mxu0 0
        %425 = vmatprep.subr.bf16.mxu0 0
        %426 = vmatpush1.bf16.msra.mxu0 0
        %427 = vmatprep.subr.bf16.mxu0 0
        %428 = vmatpush1.bf16.msra.mxu0 0
        %429 = vmatprep.subr.bf16.mxu0 0
        %430 = vmatpush1.bf16.msra.mxu0 %v413
        %431 = vmatprep.subr.bf16.mxu0 0
        %432 = vmatpush2.bf16.msra.mxu0 0
        %433 = vmatprep.subr.bf16.mxu0 0
        %434 = vmatpush2.bf16.msra.mxu0 0
        %435 = vmatprep.subr.bf16.mxu0 0
        %436 = vmatpush2.bf16.msra.mxu0 0
        %437 = vmatprep.subr.bf16.mxu0 0
        %438 = vmatpush2.bf16.msra.mxu0 0
        %439 = vmatprep.subr.bf16.mxu0 0
        %440 = vmatpush2.bf16.msra.mxu0 0
        %441 = vmatprep.subr.bf16.mxu0 0
        %442 = vmatpush2.bf16.msra.mxu0 0
        %443 = vmatprep.subr.bf16.mxu0 0
        %444 = vmatpush2.bf16.msra.mxu0 0
        %445 = vmatprep.subr.bf16.mxu0 0
        %446 = vmatpush2.bf16.msra.mxu0 0
        %447 = vmatprep.mubr.bf16.mxu0 0
        %448 = vmatmul.mubr.bf16.gmra.mxu0 %v409
        %v449 = vpop.f32.mrf.mxu0
        %v450 = vadd.f32 0.0, %v449
        %v451 = vpop.f32.mrf.mxu0
        %v452 = vpop.f32.mrf.mxu0
        %v453 = vpop.f32.mrf.mxu0
        %454 = vdwg.mxu0
        %v455 = vpack.c.bf16 %v450, %v450
        %vm456 = vcmask 60416
        %457 = vst.msk [vmem:[#allocation2] sm:$0xf] %vm456, %v455
        %458 = vrot.lane.b32.xlu0 %v342, 120
        %v459 = vpop.permute.xlu0 %458
        %460 = vrot.lane.b32.xlu0 %v342, 88
        %v461 = vpop.permute.xlu0 %460
        %v463 = vsel %vm346, %v459, 0
        %v466 = vsel %vm346, %v461, 0
        %468 = vmatprep.subr.bf16.mxu0 0
        %469 = vmatpush1.bf16.xpose.msra.mxu0 0
        %470 = vmatprep.subr.bf16.mxu0 0
        %471 = vmatpush1.bf16.xpose.msra.mxu0 0
        %472 = vmatprep.subr.bf16.mxu0 0
        %473 = vmatpush1.bf16.xpose.msra.mxu0 0
        %474 = vmatprep.subr.bf16.mxu0 0
        %475 = vmatpush1.bf16.xpose.msra.mxu0 0
        %476 = vmatprep.subr.bf16.mxu0 0
        %477 = vmatpush1.bf16.xpose.msra.mxu0 0
        %478 = vmatprep.subr.bf16.mxu0 0
        %479 = vmatpush1.bf16.xpose.msra.mxu0 0
        %480 = vmatprep.subr.bf16.mxu0 0
        %481 = vmatpush1.bf16.xpose.msra.mxu0 0
        %482 = vmatprep.subr.bf16.mxu0 0
        %483 = vmatpush1.bf16.xpose.msra.mxu0 %v466
        %484 = vmatprep.subr.bf16.mxu0 0
        %485 = vmatpush2.bf16.xpose.msra.mxu0 0
        %486 = vmatprep.subr.bf16.mxu0 0
        %487 = vmatpush2.bf16.xpose.msra.mxu0 0
        %488 = vmatprep.subr.bf16.mxu0 0
        %489 = vmatpush2.bf16.xpose.msra.mxu0 0
        %490 = vmatprep.subr.bf16.mxu0 0
        %491 = vmatpush2.bf16.xpose.msra.mxu0 0
        %492 = vmatprep.subr.bf16.mxu0 0
        %493 = vmatpush2.bf16.xpose.msra.mxu0 0
        %494 = vmatprep.subr.bf16.mxu0 0
        %495 = vmatpush2.bf16.xpose.msra.mxu0 0
        %496 = vmatprep.subr.bf16.mxu0 0
        %497 = vmatpush2.bf16.xpose.msra.mxu0 0
        %498 = vmatprep.subr.bf16.mxu0 0
        %499 = vmatpush2.bf16.xpose.msra.mxu0 0
        %500 = vmatprep.mubr.bf16.mxu0 0
        %501 = vmatmul.mubr.bf16.gmra.mxu0 %v463
        %v502 = vpop.f32.mrf.mxu0
        %v503 = vadd.f32 0.0, %v502
        %v504 = vpop.f32.mrf.mxu0
        %v505 = vpop.f32.mrf.mxu0
        %v506 = vpop.f32.mrf.mxu0
        %507 = vdwg.mxu0
        %v508 = vsel %vm346, %v503, -inf
        %509 = vmax.xlane.f32.xlu0 %v508
        %v510 = vpop.xlane.xlu0 %509
        %v511 = vsub.f32 %v503, %v510
        %v512 = vmul.f32 %v511, 1.442695
        %v513 = vpow.pop %v512
        %v514 = vsel %vm346, %v513, 0.0
        %515 = vadd.xlane.f32.xlu0 %v514
        %v516 = vpop.xlane.xlu0 %515
        %v517 = vrcp.pop %v516
        %v518 = vmul.f32 %v513, %v517
        %s519 = scalar_lea.vmem %s279, 8 [#allocation10]
        %520 = vst.msk [vmem:[%s519] sm:$0xff] %vm346, %v518
        %v521 = vpack.c.bf16 %v518, %v518
        %522 = vrot.lane.b32.xlu0 %v342, 56
        %v523 = vpop.permute.xlu0 %522
        %v525 = vsel %vm346, %v521, 0
        %v528 = vsel %vm411, %v523, 0
        %530 = vmatprep.subr.bf16.mxu0 0
        %531 = vmatpush1.bf16.msra.mxu0 0
        %532 = vmatprep.subr.bf16.mxu0 0
        %533 = vmatpush1.bf16.msra.mxu0 0
        %534 = vmatprep.subr.bf16.mxu0 0
        %535 = vmatpush1.bf16.msra.mxu0 0
        %536 = vmatprep.subr.bf16.mxu0 0
        %537 = vmatpush1.bf16.msra.mxu0 0
        %538 = vmatprep.subr.bf16.mxu0 0
        %539 = vmatpush1.bf16.msra.mxu0 0
        %540 = vmatprep.subr.bf16.mxu0 0
        %541 = vmatpush1.bf16.msra.mxu0 0
        %542 = vmatprep.subr.bf16.mxu0 0
        %543 = vmatpush1.bf16.msra.mxu0 0
        %544 = vmatprep.subr.bf16.mxu0 0
        %545 = vmatpush1.bf16.msra.mxu0 %v528
        %546 = vmatprep.subr.bf16.mxu0 0
        %547 = vmatpush2.bf16.msra.mxu0 0
        %548 = vmatprep.subr.bf16.mxu0 0
        %549 = vmatpush2.bf16.msra.mxu0 0
        %550 = vmatprep.subr.bf16.mxu0 0
        %551 = vmatpush2.bf16.msra.mxu0 0
        %552 = vmatprep.subr.bf16.mxu0 0
        %553 = vmatpush2.bf16.msra.mxu0 0
        %554 = vmatprep.subr.bf16.mxu0 0
        %555 = vmatpush2.bf16.msra.mxu0 0
        %556 = vmatprep.subr.bf16.mxu0 0
        %557 = vmatpush2.bf16.msra.mxu0 0
        %558 = vmatprep.subr.bf16.mxu0 0
        %559 = vmatpush2.bf16.msra.mxu0 0
        %560 = vmatprep.subr.bf16.mxu0 0
        %561 = vmatpush2.bf16.msra.mxu0 0
        %562 = vmatprep.mubr.bf16.mxu0 0
        %563 = vmatmul.mubr.bf16.gmra.mxu0 %v525
        %v564 = vpop.f32.mrf.mxu0
        %v565 = vadd.f32 0.0, %v564
        %v566 = vpop.f32.mrf.mxu0
        %v567 = vpop.f32.mrf.mxu0
        %v568 = vpop.f32.mrf.mxu0
        %569 = vdwg.mxu0
        %v570 = vpack.c.bf16 %v565, %v565
        %v572 = vunpack.c.l.b16 %v570
        %v573 = vpack.c.b16 %v572, %v572
        %574 = vrot.lane.b32.xlu0 %v573, 8
        %v575 = vpop.permute.xlu0 %574
        %vm577 = vcmask 126016
        %578 = vst.msk [vmem:[#allocation2] sm:$0xf] %vm577, %v575
        %579 = vrot.lane.b32.xlu0 %v342, 112
        %v580 = vpop.permute.xlu0 %579
        %581 = vrot.lane.b32.xlu0 %v342, 80
        %v582 = vpop.permute.xlu0 %581
        %v584 = vsel %vm346, %v580, 0
        %v587 = vsel %vm346, %v582, 0
        %589 = vmatprep.subr.bf16.mxu0 0
        %590 = vmatpush1.bf16.xpose.msra.mxu0 0
        %591 = vmatprep.subr.bf16.mxu0 0
        %592 = vmatpush1.bf16.xpose.msra.mxu0 0
        %593 = vmatprep.subr.bf16.mxu0 0
        %594 = vmatpush1.bf16.xpose.msra.mxu0 0
        %595 = vmatprep.subr.bf16.mxu0 0
        %596 = vmatpush1.bf16.xpose.msra.mxu0 0
        %597 = vmatprep.subr.bf16.mxu0 0
        %598 = vmatpush1.bf16.xpose.msra.mxu0 0
        %599 = vmatprep.subr.bf16.mxu0 0
        %600 = vmatpush1.bf16.xpose.msra.mxu0 0
        %601 = vmatprep.subr.bf16.mxu0 0
        %602 = vmatpush1.bf16.xpose.msra.mxu0 0
        %603 = vmatprep.subr.bf16.mxu0 0
        %604 = vmatpush1.bf16.xpose.msra.mxu0 %v587
        %605 = vmatprep.subr.bf16.mxu0 0
        %606 = vmatpush2.bf16.xpose.msra.mxu0 0
        %607 = vmatprep.subr.bf16.mxu0 0
        %608 = vmatpush2.bf16.xpose.msra.mxu0 0
        %609 = vmatprep.subr.bf16.mxu0 0
        %610 = vmatpush2.bf16.xpose.msra.mxu0 0
        %611 = vmatprep.subr.bf16.mxu0 0
        %612 = vmatpush2.bf16.xpose.msra.mxu0 0
        %613 = vmatprep.subr.bf16.mxu0 0
        %614 = vmatpush2.bf16.xpose.msra.mxu0 0
        %615 = vmatprep.subr.bf16.mxu0 0
        %616 = vmatpush2.bf16.xpose.msra.mxu0 0
        %617 = vmatprep.subr.bf16.mxu0 0
        %618 = vmatpush2.bf16.xpose.msra.mxu0 0
        %619 = vmatprep.subr.bf16.mxu0 0
        %620 = vmatpush2.bf16.xpose.msra.mxu0 0
        %621 = vmatprep.mubr.bf16.mxu0 0
        %622 = vmatmul.mubr.bf16.gmra.mxu0 %v584
        %v623 = vpop.f32.mrf.mxu0
        %v624 = vadd.f32 0.0, %v623
        %v625 = vpop.f32.mrf.mxu0
        %v626 = vpop.f32.mrf.mxu0
        %v627 = vpop.f32.mrf.mxu0
        %628 = vdwg.mxu0
        %v629 = vsel %vm346, %v624, -inf
        %630 = vmax.xlane.f32.xlu0 %v629
        %v631 = vpop.xlane.xlu0 %630
        %v632 = vsub.f32 %v624, %v631
        %v633 = vmul.f32 %v632, 1.442695
        %v634 = vpow.pop %v633
        %v635 = vsel %vm346, %v634, 0.0
        %636 = vadd.xlane.f32.xlu0 %v635
        %v637 = vpop.xlane.xlu0 %636
        %v638 = vrcp.pop %v637
        %v639 = vmul.f32 %v634, %v638
        %s640 = scalar_lea.vmem %s279, 16 [#allocation10]
        %641 = vst.msk [vmem:[%s640] sm:$0xff] %vm346, %v639
        %v642 = vpack.c.bf16 %v639, %v639
        %643 = vrot.lane.b32.xlu0 %v342, 48
        %v644 = vpop.permute.xlu0 %643
        %v646 = vsel %vm346, %v642, 0
        %v649 = vsel %vm411, %v644, 0
        %651 = vmatprep.subr.bf16.mxu0 0
        %652 = vmatpush1.bf16.msra.mxu0 0
        %653 = vmatprep.subr.bf16.mxu0 0
        %654 = vmatpush1.bf16.msra.mxu0 0
        %655 = vmatprep.subr.bf16.mxu0 0
        %656 = vmatpush1.bf16.msra.mxu0 0
        %657 = vmatprep.subr.bf16.mxu0 0
        %658 = vmatpush1.bf16.msra.mxu0 0
        %659 = vmatprep.subr.bf16.mxu0 0
        %660 = vmatpush1.bf16.msra.mxu0 0
        %661 = vmatprep.subr.bf16.mxu0 0
        %662 = vmatpush1.bf16.msra.mxu0 0
        %663 = vmatprep.subr.bf16.mxu0 0
        %664 = vmatpush1.bf16.msra.mxu0 0
        %665 = vmatprep.subr.bf16.mxu0 0
        %666 = vmatpush1.bf16.msra.mxu0 %v649
        %667 = vmatprep.subr.bf16.mxu0 0
        %668 = vmatpush2.bf16.msra.mxu0 0
        %669 = vmatprep.subr.bf16.mxu0 0
        %670 = vmatpush2.bf16.msra.mxu0 0
        %671 = vmatprep.subr.bf16.mxu0 0
        %672 = vmatpush2.bf16.msra.mxu0 0
        %673 = vmatprep.subr.bf16.mxu0 0
        %674 = vmatpush2.bf16.msra.mxu0 0
        %675 = vmatprep.subr.bf16.mxu0 0
        %676 = vmatpush2.bf16.msra.mxu0 0
        %677 = vmatprep.subr.bf16.mxu0 0
        %678 = vmatpush2.bf16.msra.mxu0 0
        %679 = vmatprep.subr.bf16.mxu0 0
        %680 = vmatpush2.bf16.msra.mxu0 0
        %681 = vmatprep.subr.bf16.mxu0 0
        %682 = vmatpush2.bf16.msra.mxu0 0
        %683 = vmatprep.mubr.bf16.mxu0 0
        %684 = vmatmul.mubr.bf16.gmra.mxu0 %v646
        %v685 = vpop.f32.mrf.mxu0
        %v686 = vadd.f32 0.0, %v685
        %v687 = vpop.f32.mrf.mxu0
        %v688 = vpop.f32.mrf.mxu0
        %v689 = vpop.f32.mrf.mxu0
        %690 = vdwg.mxu0
        %v691 = vpack.c.bf16 %v686, %v686
        %v693 = vunpack.c.l.b16 %v691
        %v694 = vpack.c.b16 %v693, %v693
        %695 = vrot.lane.b32.xlu0 %v694, 16
        %v696 = vpop.permute.xlu0 %695
        %vm698 = vcmask 191616
        %699 = vst.msk [vmem:[#allocation2] sm:$0xf] %vm698, %v696
        %700 = vrot.lane.b32.xlu0 %v342, 104
        %v701 = vpop.permute.xlu0 %700
        %702 = vrot.lane.b32.xlu0 %v342, 72
        %v703 = vpop.permute.xlu0 %702
        %v705 = vsel %vm346, %v701, 0
        %v708 = vsel %vm346, %v703, 0
        %710 = vmatprep.subr.bf16.mxu0 0
        %711 = vmatpush1.bf16.xpose.msra.mxu0 0
        %712 = vmatprep.subr.bf16.mxu0 0
        %713 = vmatpush1.bf16.xpose.msra.mxu0 0
        %714 = vmatprep.subr.bf16.mxu0 0
        %715 = vmatpush1.bf16.xpose.msra.mxu0 0
        %716 = vmatprep.subr.bf16.mxu0 0
        %717 = vmatpush1.bf16.xpose.msra.mxu0 0
        %718 = vmatprep.subr.bf16.mxu0 0
        %719 = vmatpush1.bf16.xpose.msra.mxu0 0
        %720 = vmatprep.subr.bf16.mxu0 0
        %721 = vmatpush1.bf16.xpose.msra.mxu0 0
        %722 = vmatprep.subr.bf16.mxu0 0
        %723 = vmatpush1.bf16.xpose.msra.mxu0 0
        %724 = vmatprep.subr.bf16.mxu0 0
        %725 = vmatpush1.bf16.xpose.msra.mxu0 %v708
        %726 = vmatprep.subr.bf16.mxu0 0
        %727 = vmatpush2.bf16.xpose.msra.mxu0 0
        %728 = vmatprep.subr.bf16.mxu0 0
        %729 = vmatpush2.bf16.xpose.msra.mxu0 0
        %730 = vmatprep.subr.bf16.mxu0 0
        %731 = vmatpush2.bf16.xpose.msra.mxu0 0
        %732 = vmatprep.subr.bf16.mxu0 0
        %733 = vmatpush2.bf16.xpose.msra.mxu0 0
        %734 = vmatprep.subr.bf16.mxu0 0
        %735 = vmatpush2.bf16.xpose.msra.mxu0 0
        %736 = vmatprep.subr.bf16.mxu0 0
        %737 = vmatpush2.bf16.xpose.msra.mxu0 0
        %738 = vmatprep.subr.bf16.mxu0 0
        %739 = vmatpush2.bf16.xpose.msra.mxu0 0
        %740 = vmatprep.subr.bf16.mxu0 0
        %741 = vmatpush2.bf16.xpose.msra.mxu0 0
        %742 = vmatprep.mubr.bf16.mxu0 0
        %743 = vmatmul.mubr.bf16.gmra.mxu0 %v705
        %v744 = vpop.f32.mrf.mxu0
        %v745 = vadd.f32 0.0, %v744
        %v746 = vpop.f32.mrf.mxu0
        %v747 = vpop.f32.mrf.mxu0
        %v748 = vpop.f32.mrf.mxu0
        %749 = vdwg.mxu0
        %v750 = vsel %vm346, %v745, -inf
        %751 = vmax.xlane.f32.xlu0 %v750
        %v752 = vpop.xlane.xlu0 %751
        %v753 = vsub.f32 %v745, %v752
        %v754 = vmul.f32 %v753, 1.442695
        %v755 = vpow.pop %v754
        %v756 = vsel %vm346, %v755, 0.0
        %757 = vadd.xlane.f32.xlu0 %v756
        %v758 = vpop.xlane.xlu0 %757
        %v759 = vrcp.pop %v758
        %v760 = vmul.f32 %v755, %v759
        %s761 = scalar_lea.vmem %s279, 24 [#allocation10]
        %762 = vst.msk [vmem:[%s761] sm:$0xff] %vm346, %v760
        %v763 = vpack.c.bf16 %v760, %v760
        %764 = vrot.lane.b32.xlu0 %v342, 40
        %v765 = vpop.permute.xlu0 %764
        %v767 = vsel %vm346, %v763, 0
        %v770 = vsel %vm411, %v765, 0
        %772 = vmatprep.subr.bf16.mxu0 0
        %773 = vmatpush1.bf16.msra.mxu0 0
        %774 = vmatprep.subr.bf16.mxu0 0
        %775 = vmatpush1.bf16.msra.mxu0 0
        %776 = vmatprep.subr.bf16.mxu0 0
        %777 = vmatpush1.bf16.msra.mxu0 0
        %778 = vmatprep.subr.bf16.mxu0 0
        %779 = vmatpush1.bf16.msra.mxu0 0
        %780 = vmatprep.subr.bf16.mxu0 0
        %781 = vmatpush1.bf16.msra.mxu0 0
        %782 = vmatprep.subr.bf16.mxu0 0
        %783 = vmatpush1.bf16.msra.mxu0 0
        %784 = vmatprep.subr.bf16.mxu0 0
        %785 = vmatpush1.bf16.msra.mxu0 0
        %786 = vmatprep.subr.bf16.mxu0 0
        %787 = vmatpush1.bf16.msra.mxu0 %v770
        %788 = vmatprep.subr.bf16.mxu0 0
        %789 = vmatpush2.bf16.msra.mxu0 0
        %790 = vmatprep.subr.bf16.mxu0 0
        %791 = vmatpush2.bf16.msra.mxu0 0
        %792 = vmatprep.subr.bf16.mxu0 0
        %793 = vmatpush2.bf16.msra.mxu0 0
        %794 = vmatprep.subr.bf16.mxu0 0
        %795 = vmatpush2.bf16.msra.mxu0 0
        %796 = vmatprep.subr.bf16.mxu0 0
        %797 = vmatpush2.bf16.msra.mxu0 0
        %798 = vmatprep.subr.bf16.mxu0 0
        %799 = vmatpush2.bf16.msra.mxu0 0
        %800 = vmatprep.subr.bf16.mxu0 0
        %801 = vmatpush2.bf16.msra.mxu0 0
        %802 = vmatprep.subr.bf16.mxu0 0
        %803 = vmatpush2.bf16.msra.mxu0 0
        %804 = vmatprep.mubr.bf16.mxu0 0
        %805 = vmatmul.mubr.bf16.gmra.mxu0 %v767
        %v806 = vpop.f32.mrf.mxu0
        %v807 = vadd.f32 0.0, %v806
        %v808 = vpop.f32.mrf.mxu0
        %v809 = vpop.f32.mrf.mxu0
        %v810 = vpop.f32.mrf.mxu0
        %811 = vdwg.mxu0
        %v812 = vpack.c.bf16 %v807, %v807
        %v814 = vunpack.c.l.b16 %v812
        %v815 = vpack.c.b16 %v814, %v814
        %816 = vrot.lane.b32.xlu0 %v815, 24
        %v817 = vpop.permute.xlu0 %816
        %vm819 = vcmask 257216
        %820 = vst.msk [vmem:[#allocation2] sm:$0xf] %vm819, %v817
        %v821 = vld [vmem:[#allocation2] sm:$0xf]
        %v822 = vld [vmem:[#allocation8] sm:$0xf]
        %v823 = vld [vmem:[#allocation8 + $0x4] sm:$0xf]
        %v824 = vld [vmem:[#allocation8 + $0x8] sm:$0xf]
        %v825 = vld [vmem:[#allocation8 + $0xc] sm:$0xf]
        %v826 = vld [vmem:[%s3] sm:$0x1]
        %v828 = vlaneseq
        %v829 = vshrl.u32 %v828, 7
        %v830 = vsub.s32 0, %v829
        %v831 = vrot.slane %v826, %v830
        %v837 = vunpack.c.l.b16 %v822
        %v838 = vunpack.c.l.b16 %v823
        %v839 = vunpack.c.l.b16 %v824
        %v840 = vunpack.c.l.b16 %v825
        %v841 = vpack.c.b16 %v838, %v837
        %v842 = vpack.c.b16 %v840, %v839
        %v846 = vsel %vm298, %v821, 0
        %848 = vmatprep.subr.bf16.mxu0 0
        %849 = vmatpush1.bf16.msra.mxu0 0
        %850 = vmatprep.subr.bf16.mxu0 0
        %851 = vmatpush1.bf16.msra.mxu0 0
        %852 = vmatprep.subr.bf16.mxu0 0
        %853 = vmatpush1.bf16.msra.mxu0 0
        %854 = vmatprep.subr.bf16.mxu0 0
        %855 = vmatpush1.bf16.msra.mxu0 0
        %856 = vmatprep.subr.bf16.mxu0 0
        %857 = vmatpush1.bf16.msra.mxu0 0
        %858 = vmatprep.subr.bf16.mxu0 0
        %859 = vmatpush1.bf16.msra.mxu0 0
        %860 = vmatprep.subr.bf16.mxu0 0
        %861 = vmatpush1.bf16.msra.mxu0 %v842
        %862 = vmatprep.subr.bf16.mxu0 0
        %863 = vmatpush1.bf16.msra.mxu0 %v841
        %864 = vmatprep.subr.bf16.mxu0 0
        %865 = vmatpush2.bf16.msra.mxu0 0
        %866 = vmatprep.subr.bf16.mxu0 0
        %867 = vmatpush2.bf16.msra.mxu0 0
        %868 = vmatprep.subr.bf16.mxu0 0
        %869 = vmatpush2.bf16.msra.mxu0 0
        %870 = vmatprep.subr.bf16.mxu0 0
        %871 = vmatpush2.bf16.msra.mxu0 0
        %872 = vmatprep.subr.bf16.mxu0 0
        %873 = vmatpush2.bf16.msra.mxu0 0
        %874 = vmatprep.subr.bf16.mxu0 0
        %875 = vmatpush2.bf16.msra.mxu0 0
        %876 = vmatprep.subr.bf16.mxu0 0
        %877 = vmatpush2.bf16.msra.mxu0 0
        %878 = vmatprep.subr.bf16.mxu0 0
        %879 = vmatpush2.bf16.msra.mxu0 0
        %880 = vmatprep.mubr.bf16.mxu0 0
        %881 = vmatmul.mubr.bf16.gmra.mxu0 %v846
        %v882 = vpop.f32.mrf.mxu0
        %v883 = vadd.f32 %v831, %v882
        %v884 = vpop.f32.mrf.mxu0
        %v885 = vpop.f32.mrf.mxu0
        %v886 = vpop.f32.mrf.mxu0
        %887 = vdwg.mxu0
        %888 = vst.msk [vmem:[%s272] sm:$0xff] %vm298, %v883
        %s889 = sand.u32 %s124, 1
        %s890 = scalar_lea.sflag [#allocation5], %s889
        %s891 = sand.u32 %s124, 1
        %s892 = smul.addr %s891, 8
        %s893 = scalar_lea.vmem [#allocation9], %s892
        %s894 = sand.u32 %s150, 1
        %s895 = scalar_lea.sflag [#allocation11], %s894
        %s896 = sand.u32 %s150, 1
        %s897 = smul.addr %s896, 32
        %s898 = scalar_lea.vmem [#allocation10], %s897
        // Predicated region
        $region49: #{tpu_custom_call.1} parent=35 // pred_check
          %p899 = pneg %p134
        $region50: #{tpu_custom_call.1} parent=35 // pred_check_branch
          %901 = sbr.rel (%p899) target = $region52
        $region51: #{tpu_custom_call.1} parent=35 // pred_region
          %s903 = ssub.s32 128, 128
          %904 = vsyncadd %s890, %s903
          %s905 = smul.addr %s27, 128
          %s906 = scalar_lea.hbm %s4, %s905
          %s908 = sshll.u32 %s893, 4
          %s909 = int_to_ptr.vmem [resolvable:$true] %s908
          %911 = dma.vmem_to_hbm [thread:$0]  %s909, 128, %s906, %s890
        $region52: #{tpu_custom_call.1} parent=35 // pred_fallthru
          _
        // Predicated region
        $region53: #{tpu_custom_call.1} parent=35 // pred_check
          %p912 = pneg %p160
        $region54: #{tpu_custom_call.1} parent=35 // pred_check_branch
          %914 = sbr.rel (%p912) target = $region56
        $region55: #{tpu_custom_call.1} parent=35 // pred_region
          %s916 = ssub.s32 512, 512
          %917 = vsyncadd %s895, %s916
          %s918 = smul.addr %s27, 4
          %s919 = smul.addr %s918, 128
          %s920 = scalar_lea.hbm %s5, %s919
          %s921 = sshll.u32 %s898, 4
          %s922 = int_to_ptr.vmem [resolvable:$true] %s921
          %927 = dma.vmem_to_hbm [thread:$0]  %s922, 512, %s920, %s895, 128, 128, 8
        $region56: #{tpu_custom_call.1} parent=35 // pred_fallthru
          _
      $region36: #{tpu_custom_call.1} parent=5 // pred_fallthru
        _
      %p928 = scmp.le.s32.totalorder 2, %s22
      // Predicated region
      $region57: #{tpu_custom_call.1} parent=5 // pred_check
        %p929 = pneg %p928
      $region58: #{tpu_custom_call.1} parent=5 // pred_check_branch
        %931 = sbr.rel (%p929) target = $region60
      $region59: #{tpu_custom_call.1} parent=5 // pred_region
        %s932 = ssub.s32 %s22, 2
        // Predicated region
        $region61: #{tpu_custom_call.1} parent=59 // pred_check
          %p933 = pneg %p140
        $region62: #{tpu_custom_call.1} parent=59 // pred_check_branch
          %935 = sbr.rel (%p933) target = $region64
        $region63: #{tpu_custom_call.1} parent=59 // pred_region
          %s936 = sand.u32 %s125, 1
          %s937 = scalar_lea.sflag [#allocation5], %s936
          %s938 = sand.u32 %s125, 1
          %s939 = smul.addr %s938, 8
          %s940 = scalar_lea.vmem [#allocation9], %s939
          %941 = dma.done %s937, 128
        $region64: #{tpu_custom_call.1} parent=59 // pred_fallthru
          _
        // Predicated region
        $region65: #{tpu_custom_call.1} parent=59 // pred_check
          %p942 = pneg %p166
        $region66: #{tpu_custom_call.1} parent=59 // pred_check_branch
          %944 = sbr.rel (%p942) target = $region68
        $region67: #{tpu_custom_call.1} parent=59 // pred_region
          %s945 = sand.u32 %s151, 1
          %s946 = scalar_lea.sflag [#allocation11], %s945
          %s947 = sand.u32 %s151, 1
          %s948 = smul.addr %s947, 32
          %s949 = scalar_lea.vmem [#allocation10], %s948
          %950 = dma.done %s946, 512
        $region68: #{tpu_custom_call.1} parent=59 // pred_fallthru
          _
      $region60: #{tpu_custom_call.1} parent=5 // pred_fallthru
        _
    $region6: #{tpu_custom_call.1} parent=1 // loop_footer
      %s26 = sadd.s32 1, %s22
    $region7: #{tpu_custom_call.1} parent=1 // loop_footer_branch
      %21 = sbr.rel target = $region3
    $region8: #{tpu_custom_call.1} parent=1 // loop_exit
      _
    %951 = vsyncpa [#allocation4], 1
    %s952 = scalar_lea.sflag [#allocation4], 1
    %953 = vsyncpa %s952, 1
    %954 = vsyncpa [#allocation7], 1
    %955 = vsyncpa [#allocation5], 1
    %s956 = scalar_lea.sflag [#allocation5], 1
    %957 = vsyncpa %s956, 1
    %958 = vsyncpa [#allocation11], 1
    %s959 = scalar_lea.sflag [#allocation11], 1
    %960 = vsyncpa %s959, 1

</llo_original>
